<compile_context>
chip_gen: v7x
topology: tpu7x:2x2x1
jax: 0.10.0
libtpu: 0.0.40
codegen_flags: <defaults>
</compile_context>

<pallas_src>
import jax
import jax.numpy as jnp
from jax.experimental import pallas as pl
from jax.experimental.pallas import tpu as pltpu

_LANE = 128
# Below this element count the slab plumbing + kernel launch cost more than a
# single fused XLA elementwise op; the Pallas path only pays off once the op
# is genuinely HBM-streaming bound.
_SMALL_INPUT_THRESHOLD = 1 << 17  # ~131k elements (~0.5 MiB f32)


def _linreg_kernel(w_ref, b_ref, x_ref, o_ref):
    # w_ref / b_ref: (1,) SMEM scalars.  x_ref / o_ref: (tr, cols) VMEM tiles.
    # Pure VPU work; scalar broadcast happens once per tile invocation.
    o_ref[...] = x_ref[...] * w_ref[0] + b_ref[0]


def _min_sublane(dtype) -> int:
    # (8, 128) minimum tile is for 32-bit types; narrower dtypes pack sublanes.
    itemsize = jnp.dtype(dtype).itemsize
    return {4: 8, 2: 16, 1: 32}.get(itemsize, 8)


def _run_pallas_slab(slab, w_flat, b_flat, row_tile):
    """Run y = x*w + b on a lane-dense (rows, cols) slab (cols % 128 == 0)."""
    rows, cols = slab.shape
    min_sub = _min_sublane(slab.dtype)
    tr = max(min_sub, (row_tile // min_sub) * min_sub)
    if rows <= tr:
        tr = rows  # block covers the full row dim -> always a legal block shape
    grid = (pl.cdiv(rows, tr),)  # boundary block handled by Pallas masking

    return pl.pallas_call(
        _linreg_kernel,
        out_shape=jax.ShapeDtypeStruct((rows, cols), slab.dtype),
        grid=grid,
        in_specs=[
            pl.BlockSpec(memory_space=pltpu.MemorySpace.SMEM),  # weight scalar
            pl.BlockSpec(memory_space=pltpu.MemorySpace.SMEM),  # bias scalar
            pl.BlockSpec((tr, cols), lambda i: (i, 0)),         # lane-dense x tile
        ],
        out_specs=pl.BlockSpec((tr, cols), lambda i: (i, 0)),
        # Donate the slab buffer as the output: no extra N-sized HBM alloc.
        input_output_aliases={2: 0},
        compiler_params=pltpu.CompilerParams(
            # Megacore sharding of the row grid on v7x; no-op on v5e/v6e.
            dimension_semantics=("parallel",),
            # 4 MiB tiles double-buffered in+out (16 MiB) + scratch: clears the
            # v5e 16 MiB default, leaves headroom on v7x's 64 MiB physical VMEM.
            vmem_limit_bytes=48 << 20,
        ),
    )(w_flat, b_flat, slab)


def linear_regression_forward(
    x: jax.Array,
    weight: jax.Array,
    bias: jax.Array,
    *,
    lane_width: int = 2048,
    row_tile: int = 512,
    use_pallas: bool | None = None,
) -> jax.Array:
    """Equivalent of nn.Linear(1, 1): y = x @ weight.T + bias.

    x:      (N, 1)
    weight: (1, 1)   (out_features, in_features)
    bias:   (1,)
    """
    n, f = x.shape
    assert f == 1 and weight.shape == (1, 1) and bias.shape == (1,)
    assert lane_width >= _LANE and lane_width % _LANE == 0

    w_scalar = weight[0, 0]
    b_scalar = bias[0]
    total = n

    if use_pallas is None:
        use_pallas = total >= _SMALL_INPUT_THRESHOLD
    if not use_pallas:
        # Tiny input: one fused XLA elementwise op beats any kernel launch.
        return x * w_scalar + b_scalar

    cols = lane_width
    flat = x.reshape(total)          # zero-copy metadata reshape
    w_flat = weight.reshape(1)       # 1-D SMEM scalar (avoids 2-D SMEM padding)

    bulk = (total // cols) * cols
    if bulk == 0:
        # Smaller than a single lane-dense row: nothing worth a kernel launch.
        return x * w_scalar + b_scalar

    if bulk == total:
        # Fully aligned: zero-copy reshape in, zero-copy reshape out.
        out = _run_pallas_slab(flat.reshape(total // cols, cols), w_flat, bias, row_tile)
        return out.reshape(n, 1)

    # Ragged: aligned bulk through the pipelined kernel, <cols tail in XLA.
    # TODO(synk): a masked tail store driven by an SMEM length scalar would also
    # absorb the tail into the kernel, but the <2048-element XLA tail is noise.
    bulk_out = _run_pallas_slab(flat[:bulk].reshape(bulk // cols, cols), w_flat, bias, row_tile)
    tail_out = flat[bulk:] * w_scalar + b_scalar
    return jnp.concatenate([bulk_out.reshape(bulk), tail_out]).reshape(n, 1)


if __name__ == "__main__":
    key = jax.random.PRNGKey(0)
    kx1, kx2, kx3, kw, kb = jax.random.split(key, 5)

    # Deterministic parameters (shapes from nn.Linear(1, 1)).
    weight = jax.random.uniform(kw, (1, 1), jnp.float32, minval=-1.0, maxval=1.0)
    bias = jax.random.uniform(kb, (1,), jnp.float32, minval=-1.0, maxval=1.0)

    # 1) Tiny batch: exercises the fused-XLA fast path (Pallas intentionally bypassed).
    x1 = jax.random.normal(kx1, (8, 1), jnp.float32)
    y1 = jax.block_until_ready(linear_regression_forward(x1, weight, bias))
    assert y1.shape == (8, 1)
    assert jnp.allclose(y1, x1 @ weight.T + bias, atol=1e-6), "mismatch (xla path)"

    # 2) Small but forced through the Pallas kernel: fully aligned zero-copy slab
    #    (8, 128), single grid step.
    x2 = jax.random.normal(kx2, (1024, 1), jnp.float32)
    y2 = jax.block_until_ready(
        linear_regression_forward(x2, weight, bias, lane_width=128, use_pallas=True)
    )
    assert y2.shape == (1024, 1)
    assert jnp.allclose(y2, x2 @ weight.T + bias, atol=1e-6), "mismatch (aligned pallas)"

    # 3) Ragged size forced through the kernel: 4992-element aligned bulk via the
    #    multi-block pipelined grid (grid=(5,), masked boundary block) plus an
    #    8-element XLA tail.
    x3 = jax.random.normal(kx3, (5000, 1), jnp.float32)
    y3 = jax.block_until_ready(
        linear_regression_forward(
            x3, weight, bias, lane_width=128, row_tile=8, use_pallas=True
        )
    )
    assert y3.shape == (5000, 1)
    assert jnp.allclose(y3, x3 @ weight.T + bias, atol=1e-6), "mismatch (ragged pallas)"

    print("KERNEL_OK")
</pallas_src>

<mosaic_0001>
module attributes {stable_mosaic.version = 11 : i64} {
  func.func @_linreg_kernel(%arg0: i32, %arg1: memref<1xf32, #tpu.memory_space<smem>>, %arg2: memref<1xf32, #tpu.memory_space<smem>>, %arg3: memref<8x128xf32, #tpu.memory_space<vmem>>, %arg4: memref<8x128xf32, #tpu.memory_space<vmem>>) attributes {dimension_semantics = [#tpu.dimension_semantics<parallel>], iteration_bounds = array<i64: 1>, scalar_prefetch = 0 : i64, scratch_operands = 0 : i64, tpu.core_type = #tpu.core_type<tc>, window_params = [{transform_indices = @transform_0, window_bounds = array<i64: 1>}, {transform_indices = @transform_1, window_bounds = array<i64: 1>}, {transform_indices = @transform_2, window_bounds = array<i64: 8, 128>}, {transform_indices = @transform_3, window_bounds = array<i64: 8, 128>}]} {
    %c0 = arith.constant 0 : index
    %c0_0 = arith.constant 0 : index
    %0 = vector.load %arg3[%c0, %c0_0] : memref<8x128xf32, #tpu.memory_space<vmem>>, vector<8x128xf32>
    %c0_1 = arith.constant 0 : index
    %1 = memref.load %arg1[%c0_1] : memref<1xf32, #tpu.memory_space<smem>>
    %2 = vector.broadcast %1 : f32 to vector<8x128xf32>
    %3 = arith.mulf %0, %2 : vector<8x128xf32>
    %c0_2 = arith.constant 0 : index
    %4 = memref.load %arg2[%c0_2] : memref<1xf32, #tpu.memory_space<smem>>
    %5 = vector.broadcast %4 : f32 to vector<8x128xf32>
    %6 = arith.addf %3, %5 : vector<8x128xf32>
    %c0_3 = arith.constant 0 : index
    %c0_4 = arith.constant 0 : index
    %7 = vector.load %arg4[%c0_3, %c0_4] : memref<8x128xf32, #tpu.memory_space<vmem>>, vector<8x128xf32>
    tpu.vector_store %arg4[%c0_3, %c0_4], %6 {strides = array<i32>} : memref<8x128xf32, #tpu.memory_space<vmem>>, vector<8x128xf32>,
    return
  }
  func.func @transform_0(%arg0: i32) -> i32 {
    %c0_i32 = arith.constant 0 : i32
    %c0_i32_0 = arith.constant 0 : i32
    return %c0_i32 : i32
  }
  func.func @transform_1(%arg0: i32) -> i32 {
    %c0_i32 = arith.constant 0 : i32
    %c0_i32_0 = arith.constant 0 : i32
    return %c0_i32 : i32
  }
  func.func @transform_2(%arg0: i32) -> (i32, i32) {
    %c0_i32 = arith.constant 0 : i32
    %c0_i32_0 = arith.constant 0 : i32
    return %arg0, %c0_i32 : i32, i32
  }
  func.func @transform_3(%arg0: i32) -> (i32, i32) {
    %c0_i32 = arith.constant 0 : i32
    %c0_i32_0 = arith.constant 0 : i32
    return %arg0, %c0_i32 : i32, i32
  }
}

</mosaic_0001>

<llo_original>
// kernel: tpu_custom_call.1
$region0: #{tpu_custom_call.1}
  #allocation0 [shape = 'u32[]', space=smem, size = 0x4, offset = 0x4, fixed_abs, tag = 'smem constant byte address 0x4 - core index']
  #allocation1 [shape = 'u32[144,128]{1,0:T(1,128)}', space=vmem, size = 0x12000, scoped, tag = 'internal scratch']
  #allocation2 [shape = 'f32[1]{0:T(128)S(6)}', space=smem, size = 0x200, scoped, tag = 'scoped memory for tpu_custom_call.1']
  #allocation3 [shape = 'f32[1]{0:T(128)S(6)}', space=smem, size = 0x200, scoped, tag = 'scoped memory for tpu_custom_call.1']
  %s0 = inlined_call_operand.<no memory space> [shape: f32[1], index: 0, kind: input, shape index: {}]
  %s1 = inlined_call_operand.<no memory space> [shape: f32[1], index: 1, kind: input, shape index: {}]
  %s2 = inlined_call_operand.hbm [shape: f32[8,128], index: 2, kind: input, shape index: {}, may-alias: {2,3}]
  %s3 = inlined_call_operand.hbm [shape: f32[8,128], index: 3, kind: output, shape index: {}, may-alias: {2,3}]
  %s4 = sld [smem:[#allocation0]]
  $region26: #{tpu_custom_call.1} parent=0
    _
  %s6 = ssub.s32 1, %s4
  %s7 = scalar_select 0, %s6, %s4
  %8 = sst [smem:[#allocation2]] %s0
  %9 = sst [smem:[#allocation3]] %s1
  $region1: #{tpu_custom_call.1} parent=0
    #allocation4 [shape = 'u8[4096]{0}', space=vmem, size = 0x1000, scoped, tag = 'input window, operand 2, single buffered']
    #allocation5 [shape = 's32[1]{0}', space=sflag, size = 0x4, scoped, tag = 'scoped memory for tpu_custom_call.1']
    #allocation6 [shape = 's32[1]{0}', space=sflag, size = 0x4, scoped, tag = 'scoped memory for tpu_custom_call.1']
    #allocation7 [shape = 'u8[4096]{0}', space=vmem, size = 0x1000, scoped, tag = 'output window, operand 0, single buffered']
    %10 = vsyncpa [#allocation5], 0
    %11 = vsyncpa [#allocation6], 0
    // Predicated region
    $region2: #{tpu_custom_call.1} parent=1 // pred_check
      _
    $region3: #{tpu_custom_call.1} parent=1 // pred_check_branch
      %13 = sbr.rel (0) target = $region5
    $region4: #{tpu_custom_call.1} parent=1 // pred_region
      _
    $region5: #{tpu_custom_call.1} parent=1 // pred_fallthru
      _
    // Predicated region
    $region6: #{tpu_custom_call.1} parent=1 // pred_check
      _
    $region7: #{tpu_custom_call.1} parent=1 // pred_check_branch
      %15 = sbr.rel (0) target = $region9
    $region8: #{tpu_custom_call.1} parent=1 // pred_region
      _
    $region9: #{tpu_custom_call.1} parent=1 // pred_fallthru
      _
    // Predicated region
    $region10: #{tpu_custom_call.1} parent=1 // pred_check
      _
    $region11: #{tpu_custom_call.1} parent=1 // pred_check_branch
      %17 = sbr.rel (0) target = $region13
    $region12: #{tpu_custom_call.1} parent=1 // pred_region
      %s19 = ssub.s32 128, 128
      %20 = vsyncadd [#allocation5], %s19
      %s22 = sshll.u32 [#allocation4], 4
      %s23 = int_to_ptr.vmem [resolvable:$true] %s22
      %25 = dma.hbm_to_vmem [thread:$0]  %s2, 128, %s23, [#allocation5]
    $region13: #{tpu_custom_call.1} parent=1 // pred_fallthru
      _
    // Predicated region
    $region14: #{tpu_custom_call.1} parent=1 // pred_check
      _
    $region15: #{tpu_custom_call.1} parent=1 // pred_check_branch
      %27 = sbr.rel (0) target = $region17
    $region16: #{tpu_custom_call.1} parent=1 // pred_region
      %28 = dma.done [#allocation5], 128
    $region17: #{tpu_custom_call.1} parent=1 // pred_fallthru
      _
    %v29 = vld [vmem:[#allocation4] sm:$0xff]
    %s30 = sld [smem:[#allocation2]]
    %v31 = vstv %s30
    %v32 = vmul.f32 %v29, %v31
    %s33 = sld [smem:[#allocation3]]
    %v34 = vstv %s33
    %v35 = vadd.f32 %v32, %v34
    %36 = vst [vmem:[#allocation7] sm:$0xff] %v35
    // Predicated region
    $region18: #{tpu_custom_call.1} parent=1 // pred_check
      _
    $region19: #{tpu_custom_call.1} parent=1 // pred_check_branch
      %38 = sbr.rel (0) target = $region21
    $region20: #{tpu_custom_call.1} parent=1 // pred_region
      %s40 = ssub.s32 128, 128
      %41 = vsyncadd [#allocation6], %s40
      %s43 = sshll.u32 [#allocation7], 4
      %s44 = int_to_ptr.vmem [resolvable:$true] %s43
      %46 = dma.vmem_to_hbm [thread:$0]  %s44, 128, %s3, [#allocation6]
    $region21: #{tpu_custom_call.1} parent=1 // pred_fallthru
      _
    // Predicated region
    $region22: #{tpu_custom_call.1} parent=1 // pred_check
      _
    $region23: #{tpu_custom_call.1} parent=1 // pred_check_branch
      %48 = sbr.rel (0) target = $region25
    $region24: #{tpu_custom_call.1} parent=1 // pred_region
      %49 = dma.done [#allocation6], 128
    $region25: #{tpu_custom_call.1} parent=1 // pred_fallthru
      _
    %50 = vsyncpa [#allocation5], 1
    %51 = vsyncpa [#allocation6], 1

</llo_original>
